<compile_context>
chip_gen: v6e
topology: v6e:2x2x1
jax: 0.10.0
libtpu: 0.0.40
codegen_flags: <defaults>
</compile_context>

<pallas_src>
import jax
import jax.numpy as jnp
from jax.experimental import pallas as pl
from jax.experimental.pallas import tpu as pltpu


# ----------------------------------------------------------------------------
# Kernel 1: synthetic actor scoring, flattened over the batch.
#   scores = w2^T @ tanh(W1^T @ x^T + b1^T) + b2      (all cities of all batches
#   live on the lane axis, so the output (1, B*N) is lane-dense)
# ----------------------------------------------------------------------------
def _actor_kernel(xT_ref, w1t_ref, b1t_ref, w2t_ref, b2_ref, s_ref):
    # xT: (C, B*N)  w1t: (H, C)  b1t: (H, 1)  w2t: (1, H)  b2: (1,) in SMEM
    xT = xT_ref[...].astype(jnp.bfloat16)
    w1t = w1t_ref[...].astype(jnp.bfloat16)
    h = jnp.tanh(jnp.dot(w1t, xT, preferred_element_type=jnp.float32)
                 + b1t_ref[...])                                    # (H, B*N) f32
    w2t = w2t_ref[...].astype(jnp.bfloat16)
    s = jnp.dot(w2t, h.astype(jnp.bfloat16),
                preferred_element_type=jnp.float32) + b2_ref[0]     # (1, B*N) f32
    s_ref[...] = s


def actor_scores(xT, W1T, b1T, w2T, b2):
    _, BN = xT.shape
    vmem = pl.BlockSpec(memory_space=pltpu.MemorySpace.VMEM)
    smem = pl.BlockSpec(memory_space=pltpu.MemorySpace.SMEM)
    return pl.pallas_call(
        _actor_kernel,
        out_shape=jax.ShapeDtypeStruct((1, BN), jnp.float32),
        in_specs=[vmem, vmem, vmem, vmem, smem],
        out_specs=vmem,
    )(xT, W1T, b1T, w2T, b2)


# ----------------------------------------------------------------------------
# Kernel 2: compute_reward + tour-ordered probs, whole batch in one invocation.
#   d[b,c,t] = x[b, a[b,t], c] - x[b, a[b,(t+1)%N], c]   via one batched MXU pass
#   with the (one_hot(a_t) - one_hot(a_{t+1})) difference operand.
# ----------------------------------------------------------------------------
def _reward_kernel(xT_ref, a_ref, an_ref, s_ref, r_ref, p_ref):
    B, C, N = xT_ref.shape
    xT = xT_ref[...]                                    # (B, C, N) f32 coords^T
    a = a_ref[...]                                      # (B, N, 1) i32 city at step t
    an = an_ref[...]                                    # (B, N, 1) i32 city at step (t+1)%N
    s3 = s_ref[...]                                     # (B, 1, N) f32 per-city scores

    j = jax.lax.broadcasted_iota(jnp.int32, (B, N, N), 2)
    oh = (a == j).astype(jnp.float32)                   # (B, N, N) one-hot of a[t]
    oh_next = (an == j).astype(jnp.float32)             # (B, N, N) one-hot of a[(t+1)%N]

    # Gather + cyclic difference fused into one batched matmul.
    d = jnp.einsum('bcj,btj->bct', xT, oh - oh_next,
                   preferred_element_type=jnp.float32)  # (B, C, N)
    seg = jnp.sqrt(jnp.sum(d * d, axis=1))              # (B, N) segment lengths
    r_ref[...] = jnp.sum(seg, axis=-1, keepdims=True)   # (B, 1) tour length

    # Per-city softmax (lane-axis reductions), gathered into tour order.
    m = jnp.max(s3, axis=-1, keepdims=True)
    e = jnp.exp(s3 - m)
    p3 = e / jnp.sum(e, axis=-1, keepdims=True)         # (B, 1, N)
    p_ref[...] = jnp.einsum('bcj,btj->bct', p3, oh,
                            preferred_element_type=jnp.float32)   # (B, 1, N)


def reward_and_probs(coordsT, actions3, actions_next3, scores3):
    B, C, N = coordsT.shape
    vmem = pl.BlockSpec(memory_space=pltpu.MemorySpace.VMEM)
    return pl.pallas_call(
        _reward_kernel,
        out_shape=(jax.ShapeDtypeStruct((B, 1), jnp.float32),
                   jax.ShapeDtypeStruct((B, 1, N), jnp.float32)),
        in_specs=[vmem, vmem, vmem, vmem],
        out_specs=(vmem, vmem),
    )(coordsT, actions3, actions_next3, scores3)


# ----------------------------------------------------------------------------
# Wrapper reproducing TSPSolver.forward: (R, probs, actions)
# ----------------------------------------------------------------------------
def tsp_solver_forward(coords, W1, b1, w2, b2):
    B, N, C = coords.shape
    H = W1.shape[1]

    # Layout plumbing (cheap XLA reshapes/transposes) so kernel tensors are lane-dense.
    xT_flat = coords.reshape(B * N, C).T                          # (C, B*N)
    s_row = actor_scores(xT_flat, W1.T, b1.reshape(H, 1), w2.T, b2.reshape(1))
    scores = s_row.reshape(B, N)                                  # (B, N)

    # TODO(synk): greedy/sampled action selection (argsort -> permutation) has no clean
    # Pallas TPU equivalent at this size; done in plain JAX between the two kernels.
    actions = jnp.argsort(-scores, axis=-1).astype(jnp.int32)     # (B, N)
    actions_next = jnp.roll(actions, shift=-1, axis=-1)           # a[(t+1) % N]

    coordsT = jnp.transpose(coords, (0, 2, 1))                    # (B, C, N)
    r, pT = reward_and_probs(coordsT, actions[..., None], actions_next[..., None],
                             scores[:, None, :])
    R = r[:, 0]                                                   # (B,)
    probs = pT[:, 0, :]                                           # (B, N)
    return R, probs, actions


if __name__ == "__main__":
    key = jax.random.PRNGKey(0)
    B, N, C, H = 2, 8, 2, 32                                      # batch, cities, coords, hidden
    k1, k2, k3 = jax.random.split(key, 3)

    coords = jax.random.uniform(k1, (B, N, C), jnp.float32)
    W1 = jax.random.normal(k2, (C, H), jnp.float32) * 0.1
    b1 = jnp.zeros((1, H), jnp.float32)
    w2 = jax.random.normal(k3, (H, 1), jnp.float32) * 0.1
    b2 = jnp.zeros((1, 1), jnp.float32)

    R, probs, actions = tsp_solver_forward(coords, W1, b1, w2, b2)
    jax.block_until_ready((R, probs, actions))

    # Pure-JAX reference for compute_reward (torch.gather + torch.norm loop).
    sol = jnp.take_along_axis(coords, jnp.repeat(actions[:, :, None], C, axis=2), axis=1)
    R_ref = jnp.linalg.norm(sol - jnp.roll(sol, -1, axis=1), axis=-1).sum(-1)

    assert R.shape == (B,) and probs.shape == (B, N) and actions.shape == (B, N)
    assert jnp.allclose(R, R_ref, atol=1e-5), (R, R_ref)
    assert jnp.allclose(jnp.sum(probs, axis=-1), 1.0, atol=1e-5)
    # actions must be a valid permutation of 0..N-1 per batch
    assert jnp.all(jnp.sort(actions, axis=-1) == jnp.arange(N, dtype=jnp.int32)[None, :])

    print("KERNEL_OK")
</pallas_src>

<mosaic_0001>
module attributes {stable_mosaic.version = 11 : i64} {
  func.func @_actor_kernel(%arg0: memref<2x16xf32, #tpu.memory_space<vmem>>, %arg1: memref<32x2xf32, #tpu.memory_space<vmem>>, %arg2: memref<32x1xf32, #tpu.memory_space<vmem>>, %arg3: memref<1x32xf32, #tpu.memory_space<vmem>>, %arg4: memref<1xf32, #tpu.memory_space<smem>>, %arg5: memref<1x16xf32, #tpu.memory_space<vmem>>) attributes {dimension_semantics = [], scalar_prefetch = 0 : i64, scratch_operands = 0 : i64, tpu.core_type = #tpu.core_type<tc>} {
    %c0 = arith.constant 0 : index
    %c0_0 = arith.constant 0 : index
    %0 = vector.load %arg0[%c0, %c0_0] : memref<2x16xf32, #tpu.memory_space<vmem>>, vector<2x16xf32>
    %1 = arith.truncf %0 : vector<2x16xf32> to vector<2x16xbf16>
    %c0_1 = arith.constant 0 : index
    %c0_2 = arith.constant 0 : index
    %2 = vector.load %arg1[%c0_1, %c0_2] : memref<32x2xf32, #tpu.memory_space<vmem>>, vector<32x2xf32>
    %3 = arith.truncf %2 : vector<32x2xf32> to vector<32x2xbf16>
    %cst = arith.constant dense<0.000000e+00> : vector<32x16xf32>
    %4 = tpu.matmul %3, %1, %cst {dimension_numbers = #tpu.dot_dimension_numbers<[1], [0], [0], [1], [0, 0, 1, 1], [], []>} : vector<32x2xbf16>, vector<2x16xbf16>, vector<32x16xf32> -> vector<32x16xf32>
    %c0_3 = arith.constant 0 : index
    %c0_4 = arith.constant 0 : index
    %5 = vector.load %arg2[%c0_3, %c0_4] : memref<32x1xf32, #tpu.memory_space<vmem>>, vector<32x1xf32>
    %6 = vector.broadcast %5 : vector<32x1xf32> to vector<32x16xf32>
    %7 = arith.addf %4, %6 : vector<32x16xf32>
    %8 = math.tanh %7 : vector<32x16xf32>
    %c0_5 = arith.constant 0 : index
    %c0_6 = arith.constant 0 : index
    %9 = vector.load %arg3[%c0_5, %c0_6] : memref<1x32xf32, #tpu.memory_space<vmem>>, vector<1x32xf32>
    %10 = arith.truncf %9 : vector<1x32xf32> to vector<1x32xbf16>
    %11 = arith.truncf %8 : vector<32x16xf32> to vector<32x16xbf16>
    %cst_7 = arith.constant dense<0.000000e+00> : vector<1x16xf32>
    %12 = tpu.matmul %10, %11, %cst_7 {dimension_numbers = #tpu.dot_dimension_numbers<[1], [0], [0], [1], [0, 0, 1, 1], [], []>} : vector<1x32xbf16>, vector<32x16xbf16>, vector<1x16xf32> -> vector<1x16xf32>
    %c0_8 = arith.constant 0 : index
    %13 = memref.load %arg4[%c0_8] : memref<1xf32, #tpu.memory_space<smem>>
    %14 = vector.broadcast %13 : f32 to vector<1x16xf32>
    %15 = arith.addf %12, %14 : vector<1x16xf32>
    %c0_9 = arith.constant 0 : index
    %c0_10 = arith.constant 0 : index
    %16 = vector.load %arg5[%c0_9, %c0_10] : memref<1x16xf32, #tpu.memory_space<vmem>>, vector<1x16xf32>
    tpu.vector_store %arg5[%c0_9, %c0_10], %15 {strides = array<i32>} : memref<1x16xf32, #tpu.memory_space<vmem>>, vector<1x16xf32>,
    return
  }
}

</mosaic_0001>

<llo_original>
// kernel: tpu_custom_call.1
$region0: #{tpu_custom_call.1}
  #allocation0 [shape = 'u32[]', space=smem, size = 0x4, offset = 0x4, fixed_abs, tag = 'smem constant byte address 0x4 - core index']
  #allocation1 [shape = 'u32[144,128]{1,0:T(1,128)}', space=vmem, size = 0x12000, scoped, tag = 'internal scratch']
  #allocation2 [shape = 'f32[1]{0:T(128)S(6)}', space=smem, size = 0x200, scoped, tag = 'scoped memory for tpu_custom_call.1']
  %s0 = inlined_call_operand.vmem [shape: f32[2,16], index: 0, kind: input, shape index: {}]
  %s1 = inlined_call_operand.vmem [shape: f32[32,2], index: 1, kind: input, shape index: {}]
  %s2 = inlined_call_operand.vmem [shape: f32[32,1], index: 2, kind: input, shape index: {}]
  %s3 = inlined_call_operand.vmem [shape: f32[1,32], index: 3, kind: input, shape index: {}]
  %s4 = inlined_call_operand.<no memory space> [shape: f32[1], index: 4, kind: input, shape index: {}]
  %s5 = inlined_call_operand.hbm [shape: f32[1,16], index: 5, kind: output, shape index: {}]
  %s6 = sld [smem:[#allocation0]]
  $region30: #{tpu_custom_call.1} parent=0
    _
  %s8 = ssub.s32 1, %s6
  %s9 = scalar_select 0, %s8, %s6
  %10 = sst [smem:[#allocation2]] %s4
  $region1: #{tpu_custom_call.1} parent=0
    #allocation3 [shape = 'u8[512]{0}', space=vmem, size = 0x400, scoped, tag = 'output window, operand 0, single buffered']
    #allocation4 [shape = 's32[1]{0}', space=sflag, size = 0x4, scoped, tag = 'scoped memory for tpu_custom_call.1']
    %11 = vsyncpa [#allocation4], 0
    // Predicated region
    $region2: #{tpu_custom_call.1} parent=1 // pred_check
      _
    $region3: #{tpu_custom_call.1} parent=1 // pred_check_branch
      %13 = sbr.rel (0) target = $region5
    $region4: #{tpu_custom_call.1} parent=1 // pred_region
      _
    $region5: #{tpu_custom_call.1} parent=1 // pred_fallthru
      _
    // Predicated region
    $region6: #{tpu_custom_call.1} parent=1 // pred_check
      _
    $region7: #{tpu_custom_call.1} parent=1 // pred_check_branch
      %15 = sbr.rel (0) target = $region9
    $region8: #{tpu_custom_call.1} parent=1 // pred_region
      _
    $region9: #{tpu_custom_call.1} parent=1 // pred_fallthru
      _
    // Predicated region
    $region10: #{tpu_custom_call.1} parent=1 // pred_check
      _
    $region11: #{tpu_custom_call.1} parent=1 // pred_check_branch
      %17 = sbr.rel (0) target = $region13
    $region12: #{tpu_custom_call.1} parent=1 // pred_region
      _
    $region13: #{tpu_custom_call.1} parent=1 // pred_fallthru
      _
    // Predicated region
    $region14: #{tpu_custom_call.1} parent=1 // pred_check
      _
    $region15: #{tpu_custom_call.1} parent=1 // pred_check_branch
      %19 = sbr.rel (0) target = $region17
    $region16: #{tpu_custom_call.1} parent=1 // pred_region
      _
    $region17: #{tpu_custom_call.1} parent=1 // pred_fallthru
      _
    // Predicated region
    $region18: #{tpu_custom_call.1} parent=1 // pred_check
      _
    $region19: #{tpu_custom_call.1} parent=1 // pred_check_branch
      %21 = sbr.rel (0) target = $region21
    $region20: #{tpu_custom_call.1} parent=1 // pred_region
      _
    $region21: #{tpu_custom_call.1} parent=1 // pred_fallthru
      _
    %v23 = vld [vmem:[%s0] sm:$0x3]
    %v24 = vpack.c.bf16 %v23, %v23
    %v25 = vld [vmem:[%s1] sm:$0xff]
    %v26 = vld [vmem:[%s1 + $0x8] sm:$0xff]
    %v27 = vld [vmem:[%s1 + $0x10] sm:$0xff]
    %v28 = vld [vmem:[%s1 + $0x18] sm:$0xff]
    %v29 = vpack.c.bf16 %v26, %v25
    %v30 = vpack.c.bf16 %v28, %v27
    %v31 = vld [vmem:[%s2] sm:$0xff]
    %v32 = vld [vmem:[%s2 + $0x8] sm:$0xff]
    %v33 = vld [vmem:[%s2 + $0x10] sm:$0xff]
    %v34 = vld [vmem:[%s2 + $0x18] sm:$0xff]
    %36 = vset.pattern.permute.xlu0 0
    %37 = vperm.xlu0 %36, %v31
    %v38 = vpop.permute.xlu0 %37
    %41 = vset.pattern.permute.xlu0 0
    %42 = vperm.xlu0 %41, %v32
    %v43 = vpop.permute.xlu0 %42
    %46 = vset.pattern.permute.xlu0 0
    %47 = vperm.xlu0 %46, %v33
    %v48 = vpop.permute.xlu0 %47
    %51 = vset.pattern.permute.xlu0 0
    %52 = vperm.xlu0 %51, %v34
    %v53 = vpop.permute.xlu0 %52
    %vm55 = vcmask 15360
    %v57 = vsel %vm55, %v29, 0
    %v60 = vsel %vm55, %v30, 0
    %vm62 = vcmask 1040384
    %v64 = vsel %vm62, %v24, 0
    %66 = vmatprep.subr.bf16.mxu0 0
    %67 = vmatpush1.bf16.msra.mxu0 0
    %68 = vmatprep.subr.bf16.mxu0 0
    %69 = vmatpush1.bf16.msra.mxu0 0
    %70 = vmatprep.subr.bf16.mxu0 0
    %71 = vmatpush1.bf16.msra.mxu0 0
    %72 = vmatprep.subr.bf16.mxu0 0
    %73 = vmatpush1.bf16.msra.mxu0 0
    %74 = vmatprep.subr.bf16.mxu0 0
    %75 = vmatpush1.bf16.msra.mxu0 0
    %76 = vmatprep.subr.bf16.mxu0 0
    %77 = vmatpush1.bf16.msra.mxu0 0
    %78 = vmatprep.subr.bf16.mxu0 0
    %79 = vmatpush1.bf16.msra.mxu0 0
    %80 = vmatprep.subr.bf16.mxu0 0
    %81 = vmatpush1.bf16.msra.mxu0 %v64
    %82 = vmatprep.subr.bf16.mxu0 0
    %83 = vmatpush2.bf16.msra.mxu0 0
    %84 = vmatprep.subr.bf16.mxu0 0
    %85 = vmatpush2.bf16.msra.mxu0 0
    %86 = vmatprep.subr.bf16.mxu0 0
    %87 = vmatpush2.bf16.msra.mxu0 0
    %88 = vmatprep.subr.bf16.mxu0 0
    %89 = vmatpush2.bf16.msra.mxu0 0
    %90 = vmatprep.subr.bf16.mxu0 0
    %91 = vmatpush2.bf16.msra.mxu0 0
    %92 = vmatprep.subr.bf16.mxu0 0
    %93 = vmatpush2.bf16.msra.mxu0 0
    %94 = vmatprep.subr.bf16.mxu0 0
    %95 = vmatpush2.bf16.msra.mxu0 0
    %96 = vmatprep.subr.bf16.mxu0 0
    %97 = vmatpush2.bf16.msra.mxu0 0
    %98 = vmatprep.mubr.bf16.mxu0 0
    %99 = vmatmul.mubr.bf16.gmra.mxu0 %v57
    %v100 = vpop.f32.mrf.mxu0
    %v101 = vadd.f32 %v38, %v100
    %v102 = vpop.f32.mrf.mxu0
    %v103 = vpop.f32.mrf.mxu0
    %v104 = vadd.f32 %v43, %v103
    %v105 = vpop.f32.mrf.mxu0
    %106 = vmatprep.mubr.bf16.mxu0 0
    %107 = vmatmul.mubr.bf16.gmra.mxu0 %v60
    %v108 = vpop.f32.mrf.mxu0
    %v109 = vadd.f32 %v48, %v108
    %v110 = vpop.f32.mrf.mxu0
    %v111 = vpop.f32.mrf.mxu0
    %v112 = vadd.f32 %v53, %v111
    %v113 = vpop.f32.mrf.mxu0
    %114 = vdwg.mxu0
    %v115 = vtanh.pop %v101
    %v116 = vtanh.pop %v104
    %v117 = vtanh.pop %v109
    %v118 = vtanh.pop %v112
    %v119 = vld [vmem:[%s3] sm:$0x1]
    %v120 = vpack.c.bf16 %v119, %v119
    %v121 = vpack.c.bf16 %v116, %v115
    %v122 = vpack.c.bf16 %v118, %v117
    %s123 = sld [smem:[#allocation2]]
    %v124 = vstv %s123
    %vm125 = vcmask 261120
    %v127 = vsel %vm125, %v120, 0
    %129 = vmatprep.subr.bf16.mxu0 0
    %130 = vmatpush1.bf16.msra.mxu0 0
    %131 = vmatprep.subr.bf16.mxu0 0
    %132 = vmatpush1.bf16.msra.mxu0 0
    %133 = vmatprep.subr.bf16.mxu0 0
    %134 = vmatpush1.bf16.msra.mxu0 0
    %135 = vmatprep.subr.bf16.mxu0 0
    %136 = vmatpush1.bf16.msra.mxu0 0
    %137 = vmatprep.subr.bf16.mxu0 0
    %138 = vmatpush1.bf16.msra.mxu0 0
    %139 = vmatprep.subr.bf16.mxu0 0
    %140 = vmatpush1.bf16.msra.mxu0 0
    %141 = vmatprep.subr.bf16.mxu0 0
    %142 = vmatpush1.bf16.msra.mxu0 %v122
    %143 = vmatprep.subr.bf16.mxu0 0
    %144 = vmatpush1.bf16.msra.mxu0 %v121
    %145 = vmatprep.subr.bf16.mxu0 0
    %146 = vmatpush2.bf16.msra.mxu0 0
    %147 = vmatprep.subr.bf16.mxu0 0
    %148 = vmatpush2.bf16.msra.mxu0 0
    %149 = vmatprep.subr.bf16.mxu0 0
    %150 = vmatpush2.bf16.msra.mxu0 0
    %151 = vmatprep.subr.bf16.mxu0 0
    %152 = vmatpush2.bf16.msra.mxu0 0
    %153 = vmatprep.subr.bf16.mxu0 0
    %154 = vmatpush2.bf16.msra.mxu0 0
    %155 = vmatprep.subr.bf16.mxu0 0
    %156 = vmatpush2.bf16.msra.mxu0 0
    %157 = vmatprep.subr.bf16.mxu0 0
    %158 = vmatpush2.bf16.msra.mxu0 0
    %159 = vmatprep.subr.bf16.mxu0 0
    %160 = vmatpush2.bf16.msra.mxu0 0
    %161 = vmatprep.mubr.bf16.mxu0 0
    %162 = vmatmul.mubr.bf16.gmra.mxu0 %v127
    %v163 = vpop.f32.mrf.mxu0
    %v164 = vadd.f32 %v124, %v163
    %v165 = vpop.f32.mrf.mxu0
    %v166 = vpop.f32.mrf.mxu0
    %v167 = vpop.f32.mrf.mxu0
    %168 = vdwg.mxu0
    %vm169 = vcmask 122880
    %170 = vst.msk [vmem:[#allocation3] sm:$0x1] %vm169, %v164
    // Predicated region
    $region22: #{tpu_custom_call.1} parent=1 // pred_check
      _
    $region23: #{tpu_custom_call.1} parent=1 // pred_check_branch
      %172 = sbr.rel (0) target = $region25
    $region24: #{tpu_custom_call.1} parent=1 // pred_region
      %s174 = ssub.s32 16, 16
      %175 = vsyncadd [#allocation4], %s174
      %s177 = sshll.u32 [#allocation3], 4
      %s178 = int_to_ptr.vmem [resolvable:$true] %s177
      %180 = dma.vmem_to_hbm [thread:$0]  %s178, 16, %s5, [#allocation4]
    $region25: #{tpu_custom_call.1} parent=1 // pred_fallthru
      _
    // Predicated region
    $region26: #{tpu_custom_call.1} parent=1 // pred_check
      _
    $region27: #{tpu_custom_call.1} parent=1 // pred_check_branch
      %182 = sbr.rel (0) target = $region29
    $region28: #{tpu_custom_call.1} parent=1 // pred_region
      %183 = dma.done [#allocation4], 16
    $region29: #{tpu_custom_call.1} parent=1 // pred_fallthru
      _
    %184 = vsyncpa [#allocation4], 1

</llo_original>
